<compile_context>
chip_gen: v7x
topology: tpu7x:2x2x1
jax: 0.10.0
libtpu: 0.0.40
codegen_flags: <defaults>
</compile_context>

<pallas_src>
import functools

import jax
import jax.numpy as jnp
from jax.experimental import pallas as pl
from jax.experimental.pallas import tpu as pltpu

LANE_W = 512       # lane-dense last dim (multiple of 128) -> unmasked vector stores
MAX_TILE_R = 256   # rows per grid step: 256*512*4B = 512 KiB per buffer (fits all chips)

_SQRT2 = 1.4142135623730951


def _i32(v):
    """Python int (possibly >= 2**31) -> wrapped int32 constant."""
    v &= 0xFFFFFFFF
    if v >= (1 << 31):
        v -= 1 << 32
    return jnp.int32(v)


def _srl(x, k):
    """Logical right shift of int32 bit patterns by Python int k."""
    return (x >> k) & ((1 << (32 - k)) - 1)


def _hash32(idx, seed):
    """murmur3-finalizer style hash of (element index, seed) -> 32 random bits."""
    h = idx + seed * _i32(0x9E3779B9)
    h = h ^ _srl(h, 16)
    h = h * _i32(0x85EBCA6B)
    h = h ^ _srl(h, 13)
    h = h * _i32(0xC2B2AE35)
    h = h ^ _srl(h, 16)
    return h


def white_noise_kernel(seed_ref, x_ref, o_ref, *, loc, scale, tile_r, lane_w):
    pid = pl.program_id(0)
    seed = seed_ref[0]

    # Unique global element index per output element (also unique per grid tile).
    row = jax.lax.broadcasted_iota(jnp.int32, (tile_r, lane_w), 0)
    col = jax.lax.broadcasted_iota(jnp.int32, (tile_r, lane_w), 1)
    idx = (pid * tile_r + row) * lane_w + col

    bits = _hash32(idx, seed)

    # 23 random bits -> u in (0, 1), symmetric, endpoints strictly excluded so the
    # inverse CDF below stays finite.
    mant = bits & 0x007FFFFF
    u = (mant.astype(jnp.float32) + jnp.float32(0.5)) * jnp.float32(1.0 / (1 << 23))
    t = jnp.float32(2.0) * u - jnp.float32(1.0)               # t in (-1, 1)

    # z = sqrt(2) * erfinv(t)  (Giles 2012 single-precision approximation).
    w = -jnp.log((jnp.float32(1.0) - t) * (jnp.float32(1.0) + t))

    # Central branch (w < 5).
    wc = w - jnp.float32(2.5)
    p = jnp.float32(2.81022636e-08)
    for c in (3.43273939e-07, -3.5233877e-06, -4.39150654e-06, 2.1858087e-04,
              -1.25372503e-03, -4.17768164e-03, 2.46640727e-01, 1.50140941e+00):
        p = p * wc + jnp.float32(c)

    # Tail branch (w >= 5).
    wt = jnp.sqrt(w) - jnp.float32(3.0)
    q = jnp.float32(-2.00214257e-04)
    for c in (1.00950558e-04, 1.34934322e-03, -3.67342844e-03, 5.73950773e-03,
              -7.6224613e-03, 9.43887047e-03, 1.00167406e+00, 2.83297682e+00):
        q = q * wt + jnp.float32(c)

    z = jnp.float32(_SQRT2) * jnp.where(w < jnp.float32(5.0), p, q) * t

    noise = jnp.float32(loc) + jnp.float32(scale) * z
    o_ref[...] = x_ref[...] + noise.astype(o_ref.dtype)


def white_noise(x, seed, loc=0.0, scale=1.0):
    """Elementwise x + Normal(loc, scale) noise, same shape/dtype as x."""
    orig_shape = x.shape
    total = x.size

    rows = pl.cdiv(total, LANE_W)
    tile_r = min(MAX_TILE_R, ((rows + 7) // 8) * 8)          # multiple of 8 sublanes
    rows_padded = pl.cdiv(rows, tile_r) * tile_r
    padded_total = rows_padded * LANE_W

    xf = x.reshape(-1)
    if padded_total != total:
        xf = jnp.pad(xf, (0, padded_total - total))
    x2d = xf.reshape(rows_padded, LANE_W)                    # lane-dense slab

    seed_arr = jnp.asarray([seed], dtype=jnp.int32)
    kernel = functools.partial(white_noise_kernel, loc=float(loc), scale=float(scale),
                               tile_r=tile_r, lane_w=LANE_W)

    out2d = pl.pallas_call(
        kernel,
        out_shape=jax.ShapeDtypeStruct(x2d.shape, x2d.dtype),
        grid=(rows_padded // tile_r,),
        in_specs=[
            pl.BlockSpec(memory_space=pltpu.MemorySpace.SMEM),     # seed scalar
            pl.BlockSpec((tile_r, LANE_W), lambda i: (i, 0)),      # x tile
        ],
        out_specs=pl.BlockSpec((tile_r, LANE_W), lambda i: (i, 0)),
        input_output_aliases={1: 0},                               # reuse x's HBM slab
        compiler_params=pltpu.CompilerParams(
            dimension_semantics=("parallel",)),
    )(seed_arr, x2d)

    return out2d.reshape(-1)[:total].reshape(orig_shape)


if __name__ == "__main__":
    key = jax.random.PRNGKey(0)
    x = jax.random.normal(key, (2, 4, 16, 16), dtype=jnp.float32)

    y = white_noise(x, seed=1234, loc=0.0, scale=1.0)
    y = jax.block_until_ready(y)

    assert y.shape == x.shape and y.dtype == x.dtype
    resid = y - x
    assert bool(jnp.all(jnp.isfinite(resid)))
    std = float(jnp.std(resid))
    mean = float(jnp.mean(resid))
    assert 0.7 < std < 1.3, f"residual std {std} not ~1"
    assert abs(mean) < 0.2, f"residual mean {mean} not ~0"

    # Different seeds must give different noise.
    y2 = jax.block_until_ready(white_noise(x, seed=999, loc=0.0, scale=1.0))
    assert float(jnp.max(jnp.abs(y2 - y))) > 1e-3

    print("KERNEL_OK")
</pallas_src>

<mosaic_0001>
module attributes {stable_mosaic.version = 11 : i64} {
  func.func @white_noise_kernel(%arg0: i32, %arg1: memref<1xi32, #tpu.memory_space<smem>>, %arg2: memref<8x512xf32, #tpu.memory_space<vmem>>, %arg3: memref<8x512xf32, #tpu.memory_space<vmem>>) attributes {dimension_semantics = [#tpu.dimension_semantics<parallel>], iteration_bounds = array<i64: 1>, scalar_prefetch = 0 : i64, scratch_operands = 0 : i64, tpu.core_type = #tpu.core_type<tc>, window_params = [{transform_indices = @transform_0, window_bounds = array<i64: 1>}, {transform_indices = @transform_1, window_bounds = array<i64: 8, 512>}, {transform_indices = @transform_2, window_bounds = array<i64: 8, 512>}]} {
    %c0 = arith.constant 0 : index
    %0 = memref.load %arg1[%c0] : memref<1xi32, #tpu.memory_space<smem>>
    %1 = tpu.iota {dimensions = array<i32: 0>} : vector<8x512xi32>
    %2 = tpu.iota {dimensions = array<i32: 1>} : vector<8x512xi32>
    %c8_i32 = arith.constant 8 : i32
    %3 = arith.muli %arg0, %c8_i32 : i32
    %4 = vector.broadcast %3 : i32 to vector<8x512xi32>
    %5 = arith.addi %4, %1 : vector<8x512xi32>
    %c512_i32 = arith.constant 512 : i32
    %6 = vector.broadcast %c512_i32 : i32 to vector<8x512xi32>
    %7 = arith.muli %5, %6 : vector<8x512xi32>
    %8 = arith.addi %7, %2 : vector<8x512xi32>
    %c-1640531527_i32 = arith.constant -1640531527 : i32
    %9 = arith.muli %0, %c-1640531527_i32 : i32
    %10 = vector.broadcast %9 : i32 to vector<8x512xi32>
    %11 = arith.addi %8, %10 : vector<8x512xi32>
    %c16_i32 = arith.constant 16 : i32
    %12 = vector.broadcast %c16_i32 : i32 to vector<8x512xi32>
    %13 = arith.shrsi %11, %12 : vector<8x512xi32>
    %c65535_i32 = arith.constant 65535 : i32
    %14 = vector.broadcast %c65535_i32 : i32 to vector<8x512xi32>
    %15 = arith.andi %13, %14 : vector<8x512xi32>
    %16 = arith.xori %11, %15 : vector<8x512xi32>
    %c-2048144789_i32 = arith.constant -2048144789 : i32
    %17 = vector.broadcast %c-2048144789_i32 : i32 to vector<8x512xi32>
    %18 = arith.muli %16, %17 : vector<8x512xi32>
    %c13_i32 = arith.constant 13 : i32
    %19 = vector.broadcast %c13_i32 : i32 to vector<8x512xi32>
    %20 = arith.shrsi %18, %19 : vector<8x512xi32>
    %c524287_i32 = arith.constant 524287 : i32
    %21 = vector.broadcast %c524287_i32 : i32 to vector<8x512xi32>
    %22 = arith.andi %20, %21 : vector<8x512xi32>
    %23 = arith.xori %18, %22 : vector<8x512xi32>
    %c-1028477387_i32 = arith.constant -1028477387 : i32
    %24 = vector.broadcast %c-1028477387_i32 : i32 to vector<8x512xi32>
    %25 = arith.muli %23, %24 : vector<8x512xi32>
    %c16_i32_0 = arith.constant 16 : i32
    %26 = vector.broadcast %c16_i32_0 : i32 to vector<8x512xi32>
    %27 = arith.shrsi %25, %26 : vector<8x512xi32>
    %c65535_i32_1 = arith.constant 65535 : i32
    %28 = vector.broadcast %c65535_i32_1 : i32 to vector<8x512xi32>
    %29 = arith.andi %27, %28 : vector<8x512xi32>
    %30 = arith.xori %25, %29 : vector<8x512xi32>
    %c8388607_i32 = arith.constant 8388607 : i32
    %31 = vector.broadcast %c8388607_i32 : i32 to vector<8x512xi32>
    %32 = arith.andi %30, %31 : vector<8x512xi32>
    %33 = arith.sitofp %32 : vector<8x512xi32> to vector<8x512xf32>
    %cst = arith.constant 5.000000e-01 : f32
    %34 = vector.broadcast %cst : f32 to vector<8x512xf32>
    %35 = arith.addf %33, %34 : vector<8x512xf32>
    %cst_2 = arith.constant 1.1920929E-7 : f32
    %36 = vector.broadcast %cst_2 : f32 to vector<8x512xf32>
    %37 = arith.mulf %35, %36 : vector<8x512xf32>
    %cst_3 = arith.constant 2.000000e+00 : f32
    %38 = vector.broadcast %cst_3 : f32 to vector<8x512xf32>
    %39 = arith.mulf %38, %37 : vector<8x512xf32>
    %cst_4 = arith.constant 1.000000e+00 : f32
    %40 = vector.broadcast %cst_4 : f32 to vector<8x512xf32>
    %41 = arith.subf %39, %40 : vector<8x512xf32>
    %cst_5 = arith.constant 1.000000e+00 : f32
    %42 = vector.broadcast %cst_5 : f32 to vector<8x512xf32>
    %43 = arith.subf %42, %41 : vector<8x512xf32>
    %cst_6 = arith.constant 1.000000e+00 : f32
    %44 = vector.broadcast %cst_6 : f32 to vector<8x512xf32>
    %45 = arith.addf %44, %41 : vector<8x512xf32>
    %46 = arith.mulf %43, %45 : vector<8x512xf32>
    %47 = math.log %46 : vector<8x512xf32>
    %cst_7 = arith.constant 0.000000e+00 : f32
    %48 = vector.broadcast %cst_7 : f32 to vector<8x512xf32>
    %49 = arith.subf %48, %47 : vector<8x512xf32>
    %cst_8 = arith.constant 2.500000e+00 : f32
    %50 = vector.broadcast %cst_8 : f32 to vector<8x512xf32>
    %51 = arith.subf %49, %50 : vector<8x512xf32>
    %cst_9 = arith.constant 2.81022636E-8 : f32
    %52 = vector.broadcast %cst_9 : f32 to vector<8x512xf32>
    %53 = arith.mulf %52, %51 : vector<8x512xf32>
    %cst_10 = arith.constant 3.43273939E-7 : f32
    %54 = vector.broadcast %cst_10 : f32 to vector<8x512xf32>
    %55 = arith.addf %53, %54 : vector<8x512xf32>
    %56 = arith.mulf %55, %51 : vector<8x512xf32>
    %cst_11 = arith.constant -3.5233877E-6 : f32
    %57 = vector.broadcast %cst_11 : f32 to vector<8x512xf32>
    %58 = arith.addf %56, %57 : vector<8x512xf32>
    %59 = arith.mulf %58, %51 : vector<8x512xf32>
    %cst_12 = arith.constant -4.39150654E-6 : f32
    %60 = vector.broadcast %cst_12 : f32 to vector<8x512xf32>
    %61 = arith.addf %59, %60 : vector<8x512xf32>
    %62 = arith.mulf %61, %51 : vector<8x512xf32>
    %cst_13 = arith.constant 2.1858087E-4 : f32
    %63 = vector.broadcast %cst_13 : f32 to vector<8x512xf32>
    %64 = arith.addf %62, %63 : vector<8x512xf32>
    %65 = arith.mulf %64, %51 : vector<8x512xf32>
    %cst_14 = arith.constant -0.00125372503 : f32
    %66 = vector.broadcast %cst_14 : f32 to vector<8x512xf32>
    %67 = arith.addf %65, %66 : vector<8x512xf32>
    %68 = arith.mulf %67, %51 : vector<8x512xf32>
    %cst_15 = arith.constant -0.00417768164 : f32
    %69 = vector.broadcast %cst_15 : f32 to vector<8x512xf32>
    %70 = arith.addf %68, %69 : vector<8x512xf32>
    %71 = arith.mulf %70, %51 : vector<8x512xf32>
    %cst_16 = arith.constant 0.246640727 : f32
    %72 = vector.broadcast %cst_16 : f32 to vector<8x512xf32>
    %73 = arith.addf %71, %72 : vector<8x512xf32>
    %74 = arith.mulf %73, %51 : vector<8x512xf32>
    %cst_17 = arith.constant 1.50140941 : f32
    %75 = vector.broadcast %cst_17 : f32 to vector<8x512xf32>
    %76 = arith.addf %74, %75 : vector<8x512xf32>
    %77 = math.sqrt %49 : vector<8x512xf32>
    %cst_18 = arith.constant 3.000000e+00 : f32
    %78 = vector.broadcast %cst_18 : f32 to vector<8x512xf32>
    %79 = arith.subf %77, %78 : vector<8x512xf32>
    %cst_19 = arith.constant -2.00214257E-4 : f32
    %80 = vector.broadcast %cst_19 : f32 to vector<8x512xf32>
    %81 = arith.mulf %80, %79 : vector<8x512xf32>
    %cst_20 = arith.constant 1.00950558E-4 : f32
    %82 = vector.broadcast %cst_20 : f32 to vector<8x512xf32>
    %83 = arith.addf %81, %82 : vector<8x512xf32>
    %84 = arith.mulf %83, %79 : vector<8x512xf32>
    %cst_21 = arith.constant 0.00134934322 : f32
    %85 = vector.broadcast %cst_21 : f32 to vector<8x512xf32>
    %86 = arith.addf %84, %85 : vector<8x512xf32>
    %87 = arith.mulf %86, %79 : vector<8x512xf32>
    %cst_22 = arith.constant -0.00367342844 : f32
    %88 = vector.broadcast %cst_22 : f32 to vector<8x512xf32>
    %89 = arith.addf %87, %88 : vector<8x512xf32>
    %90 = arith.mulf %89, %79 : vector<8x512xf32>
    %cst_23 = arith.constant 0.00573950773 : f32
    %91 = vector.broadcast %cst_23 : f32 to vector<8x512xf32>
    %92 = arith.addf %90, %91 : vector<8x512xf32>
    %93 = arith.mulf %92, %79 : vector<8x512xf32>
    %cst_24 = arith.constant -0.0076224613 : f32
    %94 = vector.broadcast %cst_24 : f32 to vector<8x512xf32>
    %95 = arith.addf %93, %94 : vector<8x512xf32>
    %96 = arith.mulf %95, %79 : vector<8x512xf32>
    %cst_25 = arith.constant 0.00943887047 : f32
    %97 = vector.broadcast %cst_25 : f32 to vector<8x512xf32>
    %98 = arith.addf %96, %97 : vector<8x512xf32>
    %99 = arith.mulf %98, %79 : vector<8x512xf32>
    %cst_26 = arith.constant 1.00167406 : f32
    %100 = vector.broadcast %cst_26 : f32 to vector<8x512xf32>
    %101 = arith.addf %99, %100 : vector<8x512xf32>
    %102 = arith.mulf %101, %79 : vector<8x512xf32>
    %cst_27 = arith.constant 2.83297682 : f32
    %103 = vector.broadcast %cst_27 : f32 to vector<8x512xf32>
    %104 = arith.addf %102, %103 : vector<8x512xf32>
    %cst_28 = arith.constant 5.000000e+00 : f32
    %105 = vector.broadcast %cst_28 : f32 to vector<8x512xf32>
    %106 = arith.cmpf olt, %49, %105 : vector<8x512xf32>
    %107 = arith.select %106, %76, %104 : vector<8x512xi1>, vector<8x512xf32>
    %cst_29 = arith.constant 1.41421354 : f32
    %108 = vector.broadcast %cst_29 : f32 to vector<8x512xf32>
    %109 = arith.mulf %108, %107 : vector<8x512xf32>
    %110 = arith.mulf %109, %41 : vector<8x512xf32>
    %cst_30 = arith.constant 1.000000e+00 : f32
    %111 = vector.broadcast %cst_30 : f32 to vector<8x512xf32>
    %112 = arith.mulf %111, %110 : vector<8x512xf32>
    %cst_31 = arith.constant 0.000000e+00 : f32
    %113 = vector.broadcast %cst_31 : f32 to vector<8x512xf32>
    %114 = arith.addf %113, %112 : vector<8x512xf32>
    %c0_32 = arith.constant 0 : index
    %c0_33 = arith.constant 0 : index
    %115 = vector.load %arg2[%c0_32, %c0_33] : memref<8x512xf32, #tpu.memory_space<vmem>>, vector<8x512xf32>
    %116 = arith.addf %115, %114 : vector<8x512xf32>
    %c0_34 = arith.constant 0 : index
    %c0_35 = arith.constant 0 : index
    %117 = vector.load %arg3[%c0_34, %c0_35] : memref<8x512xf32, #tpu.memory_space<vmem>>, vector<8x512xf32>
    tpu.vector_store %arg3[%c0_34, %c0_35], %116 {strides = array<i32>} : memref<8x512xf32, #tpu.memory_space<vmem>>, vector<8x512xf32>,
    return
  }
  func.func @transform_0(%arg0: i32) -> i32 {
    %c0_i32 = arith.constant 0 : i32
    %c0_i32_0 = arith.constant 0 : i32
    return %c0_i32 : i32
  }
  func.func @transform_1(%arg0: i32) -> (i32, i32) {
    %c0_i32 = arith.constant 0 : i32
    %c0_i32_0 = arith.constant 0 : i32
    return %arg0, %c0_i32 : i32, i32
  }
  func.func @transform_2(%arg0: i32) -> (i32, i32) {
    %c0_i32 = arith.constant 0 : i32
    %c0_i32_0 = arith.constant 0 : i32
    return %arg0, %c0_i32 : i32, i32
  }
}

</mosaic_0001>

<llo_original>
// kernel: tpu_custom_call.1
$region0: #{tpu_custom_call.1}
  #allocation0 [shape = 'u32[]', space=smem, size = 0x4, offset = 0x4, fixed_abs, tag = 'smem constant byte address 0x4 - core index']
  #allocation1 [shape = 'u32[144,128]{1,0:T(1,128)}', space=vmem, size = 0x12000, scoped, tag = 'internal scratch']
  #allocation2 [shape = 's32[1]{0:T(128)S(6)}', space=smem, size = 0x200, scoped, tag = 'scoped memory for tpu_custom_call.1']
  %s0 = inlined_call_operand.<no memory space> [shape: s32[1], index: 0, kind: input, shape index: {}]
  %s1 = inlined_call_operand.hbm [shape: f32[8,512], index: 1, kind: input, shape index: {}, may-alias: {1,2}]
  %s2 = inlined_call_operand.hbm [shape: f32[8,512], index: 2, kind: output, shape index: {}, may-alias: {1,2}]
  %s3 = sld [smem:[#allocation0]]
  $region22: #{tpu_custom_call.1} parent=0
    _
  %s5 = ssub.s32 1, %s3
  %s6 = scalar_select 0, %s5, %s3
  %7 = sst [smem:[#allocation2]] %s0
  $region1: #{tpu_custom_call.1} parent=0
    #allocation3 [shape = 'u8[16384]{0}', space=vmem, size = 0x4000, scoped, tag = 'input window, operand 1, single buffered']
    #allocation4 [shape = 's32[1]{0}', space=sflag, size = 0x4, scoped, tag = 'scoped memory for tpu_custom_call.1']
    #allocation5 [shape = 's32[1]{0}', space=sflag, size = 0x4, scoped, tag = 'scoped memory for tpu_custom_call.1']
    #allocation6 [shape = 'u8[16384]{0}', space=vmem, size = 0x4000, scoped, tag = 'output window, operand 0, single buffered']
    %8 = vsyncpa [#allocation4], 0
    %9 = vsyncpa [#allocation5], 0
    // Predicated region
    $region2: #{tpu_custom_call.1} parent=1 // pred_check
      _
    $region3: #{tpu_custom_call.1} parent=1 // pred_check_branch
      %11 = sbr.rel (0) target = $region5
    $region4: #{tpu_custom_call.1} parent=1 // pred_region
      _
    $region5: #{tpu_custom_call.1} parent=1 // pred_fallthru
      _
    // Predicated region
    $region6: #{tpu_custom_call.1} parent=1 // pred_check
      _
    $region7: #{tpu_custom_call.1} parent=1 // pred_check_branch
      %13 = sbr.rel (0) target = $region9
    $region8: #{tpu_custom_call.1} parent=1 // pred_region
      %s15 = ssub.s32 512, 512
      %16 = vsyncadd [#allocation4], %s15
      %s18 = sshll.u32 [#allocation3], 4
      %s19 = int_to_ptr.vmem [resolvable:$true] %s18
      %21 = dma.hbm_to_vmem [thread:$0]  %s1, 512, %s19, [#allocation4]
    $region9: #{tpu_custom_call.1} parent=1 // pred_fallthru
      _
    // Predicated region
    $region10: #{tpu_custom_call.1} parent=1 // pred_check
      _
    $region11: #{tpu_custom_call.1} parent=1 // pred_check_branch
      %23 = sbr.rel (0) target = $region13
    $region12: #{tpu_custom_call.1} parent=1 // pred_region
      %24 = dma.done [#allocation4], 512
    $region13: #{tpu_custom_call.1} parent=1 // pred_fallthru
      _
    %s25 = sld [smem:[#allocation2]]
    %v26 = vlaneseq
    %v27 = vshrl.u32 %v26, 7
    %v28 = vlaneseq
    %v29 = vand.u32 %v28, 127
    %v30 = vadd.s32 %v29, 128
    %v31 = vadd.s32 %v29, 256
    %v32 = vadd.s32 %v29, 384
    %s33 = smul.u32 0, 8
    %v34 = vstv %s33
    %v35 = vadd.s32 %v34, %v27
    %v36 = vmul.u32 %v35, 512
    %v37 = vadd.s32 %v36, %v29
    %v38 = vadd.s32 %v36, %v30
    %v39 = vadd.s32 %v36, %v31
    %v40 = vadd.s32 %v36, %v32
    %s41 = smul.u32 %s25, 2654435769
    %v42 = vstv %s41
    %v43 = vadd.s32 %v37, %v42
    %v44 = vadd.s32 %v38, %v42
    %v45 = vadd.s32 %v39, %v42
    %v46 = vadd.s32 %v40, %v42
    %v47 = vshra.s32 %v43, 16
    %v48 = vshra.s32 %v44, 16
    %v49 = vshra.s32 %v45, 16
    %v50 = vshra.s32 %v46, 16
    %v51 = vand.u32 %v47, 65535
    %v52 = vand.u32 %v48, 65535
    %v53 = vand.u32 %v49, 65535
    %v54 = vand.u32 %v50, 65535
    %v55 = vxor.u32 %v43, %v51
    %v56 = vxor.u32 %v44, %v52
    %v57 = vxor.u32 %v45, %v53
    %v58 = vxor.u32 %v46, %v54
    %v59 = vmul.u32 %v55, 2246822507
    %v60 = vmul.u32 %v56, 2246822507
    %v61 = vmul.u32 %v57, 2246822507
    %v62 = vmul.u32 %v58, 2246822507
    %v63 = vshra.s32 %v59, 13
    %v64 = vshra.s32 %v60, 13
    %v65 = vshra.s32 %v61, 13
    %v66 = vshra.s32 %v62, 13
    %v67 = vand.u32 %v63, 524287
    %v68 = vand.u32 %v64, 524287
    %v69 = vand.u32 %v65, 524287
    %v70 = vand.u32 %v66, 524287
    %v71 = vxor.u32 %v59, %v67
    %v72 = vxor.u32 %v60, %v68
    %v73 = vxor.u32 %v61, %v69
    %v74 = vxor.u32 %v62, %v70
    %v75 = vmul.u32 %v71, 3266489909
    %v76 = vmul.u32 %v72, 3266489909
    %v77 = vmul.u32 %v73, 3266489909
    %v78 = vmul.u32 %v74, 3266489909
    %v79 = vshra.s32 %v75, 16
    %v80 = vshra.s32 %v76, 16
    %v81 = vshra.s32 %v77, 16
    %v82 = vshra.s32 %v78, 16
    %v83 = vand.u32 %v79, 65535
    %v84 = vand.u32 %v80, 65535
    %v85 = vand.u32 %v81, 65535
    %v86 = vand.u32 %v82, 65535
    %v87 = vxor.u32 %v75, %v83
    %v88 = vxor.u32 %v76, %v84
    %v89 = vxor.u32 %v77, %v85
    %v90 = vxor.u32 %v78, %v86
    %v91 = vand.u32 %v87, 8388607
    %v92 = vand.u32 %v88, 8388607
    %v93 = vand.u32 %v89, 8388607
    %v94 = vand.u32 %v90, 8388607
    %v95 = vcvt.s32.f32 %v91
    %v96 = vcvt.s32.f32 %v92
    %v97 = vcvt.s32.f32 %v93
    %v98 = vcvt.s32.f32 %v94
    %v99 = vadd.f32 %v95, 0.5
    %v100 = vadd.f32 %v96, 0.5
    %v101 = vadd.f32 %v97, 0.5
    %v102 = vadd.f32 %v98, 0.5
    %v103 = vmul.f32 %v99, 1.1920929e-07
    %v104 = vmul.f32 %v100, 1.1920929e-07
    %v105 = vmul.f32 %v101, 1.1920929e-07
    %v106 = vmul.f32 %v102, 1.1920929e-07
    %v107 = vmul.f32 %v103, 2.0
    %v108 = vmul.f32 %v104, 2.0
    %v109 = vmul.f32 %v105, 2.0
    %v110 = vmul.f32 %v106, 2.0
    %v111 = vsub.f32 %v107, 1.0
    %v112 = vsub.f32 %v108, 1.0
    %v113 = vsub.f32 %v109, 1.0
    %v114 = vsub.f32 %v110, 1.0
    %v115 = vsub.f32 1.0, %v111
    %v116 = vsub.f32 1.0, %v112
    %v117 = vsub.f32 1.0, %v113
    %v118 = vsub.f32 1.0, %v114
    %v119 = vadd.f32 %v111, 1.0
    %v120 = vadd.f32 %v112, 1.0
    %v121 = vadd.f32 %v113, 1.0
    %v122 = vadd.f32 %v114, 1.0
    %v123 = vmul.f32 %v115, %v119
    %v124 = vmul.f32 %v116, %v120
    %v125 = vmul.f32 %v117, %v121
    %v126 = vmul.f32 %v118, %v122
    %v127 = vlog2.pop %v123
    %v128 = vmul.f32 %v127, 0.6931472
    %v129 = vlog2.pop %v124
    %v130 = vmul.f32 %v129, 0.6931472
    %v131 = vlog2.pop %v125
    %v132 = vmul.f32 %v131, 0.6931472
    %v133 = vlog2.pop %v126
    %v134 = vmul.f32 %v133, 0.6931472
    %v135 = vsub.f32 0.0, %v128
    %v136 = vsub.f32 0.0, %v130
    %v137 = vsub.f32 0.0, %v132
    %v138 = vsub.f32 0.0, %v134
    %v139 = vsub.f32 %v135, 2.5
    %v140 = vsub.f32 %v136, 2.5
    %v141 = vsub.f32 %v137, 2.5
    %v142 = vsub.f32 %v138, 2.5
    %v143 = vmul.f32 %v139, 2.8102264e-08
    %v144 = vmul.f32 %v140, 2.8102264e-08
    %v145 = vmul.f32 %v141, 2.8102264e-08
    %v146 = vmul.f32 %v142, 2.8102264e-08
    %v147 = vadd.f32 %v143, 3.4327394e-07
    %v148 = vadd.f32 %v144, 3.4327394e-07
    %v149 = vadd.f32 %v145, 3.4327394e-07
    %v150 = vadd.f32 %v146, 3.4327394e-07
    %v151 = vmul.f32 %v147, %v139
    %v152 = vmul.f32 %v148, %v140
    %v153 = vmul.f32 %v149, %v141
    %v154 = vmul.f32 %v150, %v142
    %v155 = vadd.f32 %v151, -3.5233877e-06
    %v156 = vadd.f32 %v152, -3.5233877e-06
    %v157 = vadd.f32 %v153, -3.5233877e-06
    %v158 = vadd.f32 %v154, -3.5233877e-06
    %v159 = vmul.f32 %v155, %v139
    %v160 = vmul.f32 %v156, %v140
    %v161 = vmul.f32 %v157, %v141
    %v162 = vmul.f32 %v158, %v142
    %v163 = vadd.f32 %v159, -4.3915065e-06
    %v164 = vadd.f32 %v160, -4.3915065e-06
    %v165 = vadd.f32 %v161, -4.3915065e-06
    %v166 = vadd.f32 %v162, -4.3915065e-06
    %v167 = vmul.f32 %v163, %v139
    %v168 = vmul.f32 %v164, %v140
    %v169 = vmul.f32 %v165, %v141
    %v170 = vmul.f32 %v166, %v142
    %v171 = vadd.f32 %v167, 0.00021858087
    %v172 = vadd.f32 %v168, 0.00021858087
    %v173 = vadd.f32 %v169, 0.00021858087
    %v174 = vadd.f32 %v170, 0.00021858087
    %v175 = vmul.f32 %v171, %v139
    %v176 = vmul.f32 %v172, %v140
    %v177 = vmul.f32 %v173, %v141
    %v178 = vmul.f32 %v174, %v142
    %v179 = vadd.f32 %v175, -0.001253725
    %v180 = vadd.f32 %v176, -0.001253725
    %v181 = vadd.f32 %v177, -0.001253725
    %v182 = vadd.f32 %v178, -0.001253725
    %v183 = vmul.f32 %v179, %v139
    %v184 = vmul.f32 %v180, %v140
    %v185 = vmul.f32 %v181, %v141
    %v186 = vmul.f32 %v182, %v142
    %v187 = vadd.f32 %v183, -0.0041776816
    %v188 = vadd.f32 %v184, -0.0041776816
    %v189 = vadd.f32 %v185, -0.0041776816
    %v190 = vadd.f32 %v186, -0.0041776816
    %v191 = vmul.f32 %v187, %v139
    %v192 = vmul.f32 %v188, %v140
    %v193 = vmul.f32 %v189, %v141
    %v194 = vmul.f32 %v190, %v142
    %v195 = vadd.f32 %v191, 0.24664073
    %v196 = vadd.f32 %v192, 0.24664073
    %v197 = vadd.f32 %v193, 0.24664073
    %v198 = vadd.f32 %v194, 0.24664073
    %v199 = vmul.f32 %v195, %v139
    %v200 = vmul.f32 %v196, %v140
    %v201 = vmul.f32 %v197, %v141
    %v202 = vmul.f32 %v198, %v142
    %v203 = vadd.f32 %v199, 1.5014094
    %v204 = vadd.f32 %v200, 1.5014094
    %v205 = vadd.f32 %v201, 1.5014094
    %v206 = vadd.f32 %v202, 1.5014094
    %v207 = vrsqrt.pop %v135
    %v208 = vmul.f32 %v135, %v207
    %vm209 = vcmp.eq.f32.partialorder %v135, inf
    %v210 = vsel %vm209, %v135, %v208
    %vm211 = vcmp.eq.f32.partialorder %v135, 0.0
    %v212 = vand.u32 %v135, 2147483648
    %v213 = vsel %vm211, %v212, %v210
    %v214 = vrsqrt.pop %v136
    %v215 = vmul.f32 %v136, %v214
    %vm216 = vcmp.eq.f32.partialorder %v136, inf
    %v217 = vsel %vm216, %v136, %v215
    %vm218 = vcmp.eq.f32.partialorder %v136, 0.0
    %v219 = vand.u32 %v136, 2147483648
    %v220 = vsel %vm218, %v219, %v217
    %v221 = vrsqrt.pop %v137
    %v222 = vmul.f32 %v137, %v221
    %vm223 = vcmp.eq.f32.partialorder %v137, inf
    %v224 = vsel %vm223, %v137, %v222
    %vm225 = vcmp.eq.f32.partialorder %v137, 0.0
    %v226 = vand.u32 %v137, 2147483648
    %v227 = vsel %vm225, %v226, %v224
    %v228 = vrsqrt.pop %v138
    %v229 = vmul.f32 %v138, %v228
    %vm230 = vcmp.eq.f32.partialorder %v138, inf
    %v231 = vsel %vm230, %v138, %v229
    %vm232 = vcmp.eq.f32.partialorder %v138, 0.0
    %v233 = vand.u32 %v138, 2147483648
    %v234 = vsel %vm232, %v233, %v231
    %v235 = vsub.f32 %v213, 3.0
    %v236 = vsub.f32 %v220, 3.0
    %v237 = vsub.f32 %v227, 3.0
    %v238 = vsub.f32 %v234, 3.0
    %v239 = vmul.f32 %v235, -0.00020021426
    %v240 = vmul.f32 %v236, -0.00020021426
    %v241 = vmul.f32 %v237, -0.00020021426
    %v242 = vmul.f32 %v238, -0.00020021426
    %v243 = vadd.f32 %v239, 0.00010095056
    %v244 = vadd.f32 %v240, 0.00010095056
    %v245 = vadd.f32 %v241, 0.00010095056
    %v246 = vadd.f32 %v242, 0.00010095056
    %v247 = vmul.f32 %v243, %v235
    %v248 = vmul.f32 %v244, %v236
    %v249 = vmul.f32 %v245, %v237
    %v250 = vmul.f32 %v246, %v238
    %v251 = vadd.f32 %v247, 0.0013493432
    %v252 = vadd.f32 %v248, 0.0013493432
    %v253 = vadd.f32 %v249, 0.0013493432
    %v254 = vadd.f32 %v250, 0.0013493432
    %v255 = vmul.f32 %v251, %v235
    %v256 = vmul.f32 %v252, %v236
    %v257 = vmul.f32 %v253, %v237
    %v258 = vmul.f32 %v254, %v238
    %v259 = vadd.f32 %v255, -0.0036734284
    %v260 = vadd.f32 %v256, -0.0036734284
    %v261 = vadd.f32 %v257, -0.0036734284
    %v262 = vadd.f32 %v258, -0.0036734284
    %v263 = vmul.f32 %v259, %v235
    %v264 = vmul.f32 %v260, %v236
    %v265 = vmul.f32 %v261, %v237
    %v266 = vmul.f32 %v262, %v238
    %v267 = vadd.f32 %v263, 0.0057395077
    %v268 = vadd.f32 %v264, 0.0057395077
    %v269 = vadd.f32 %v265, 0.0057395077
    %v270 = vadd.f32 %v266, 0.0057395077
    %v271 = vmul.f32 %v267, %v235
    %v272 = vmul.f32 %v268, %v236
    %v273 = vmul.f32 %v269, %v237
    %v274 = vmul.f32 %v270, %v238
    %v275 = vadd.f32 %v271, -0.0076224613
    %v276 = vadd.f32 %v272, -0.0076224613
    %v277 = vadd.f32 %v273, -0.0076224613
    %v278 = vadd.f32 %v274, -0.0076224613
    %v279 = vmul.f32 %v275, %v235
    %v280 = vmul.f32 %v276, %v236
    %v281 = vmul.f32 %v277, %v237
    %v282 = vmul.f32 %v278, %v238
    %v283 = vadd.f32 %v279, 0.0094388705
    %v284 = vadd.f32 %v280, 0.0094388705
    %v285 = vadd.f32 %v281, 0.0094388705
    %v286 = vadd.f32 %v282, 0.0094388705
    %v287 = vmul.f32 %v283, %v235
    %v288 = vmul.f32 %v284, %v236
    %v289 = vmul.f32 %v285, %v237
    %v290 = vmul.f32 %v286, %v238
    %v291 = vadd.f32 %v287, 1.001674
    %v292 = vadd.f32 %v288, 1.001674
    %v293 = vadd.f32 %v289, 1.001674
    %v294 = vadd.f32 %v290, 1.001674
    %v295 = vmul.f32 %v291, %v235
    %v296 = vmul.f32 %v292, %v236
    %v297 = vmul.f32 %v293, %v237
    %v298 = vmul.f32 %v294, %v238
    %v299 = vadd.f32 %v295, 2.8329768
    %v300 = vadd.f32 %v296, 2.8329768
    %v301 = vadd.f32 %v297, 2.8329768
    %v302 = vadd.f32 %v298, 2.8329768
    %vm303 = vcmp.lt.f32.partialorder %v135, 5.0
    %vm304 = vcmp.lt.f32.partialorder %v136, 5.0
    %vm305 = vcmp.lt.f32.partialorder %v137, 5.0
    %vm306 = vcmp.lt.f32.partialorder %v138, 5.0
    %v307 = vsel %vm303, %v203, %v299
    %v308 = vsel %vm304, %v204, %v300
    %v309 = vsel %vm305, %v205, %v301
    %v310 = vsel %vm306, %v206, %v302
    %v311 = vmul.f32 %v307, 1.4142135
    %v312 = vmul.f32 %v308, 1.4142135
    %v313 = vmul.f32 %v309, 1.4142135
    %v314 = vmul.f32 %v310, 1.4142135
    %v315 = vmul.f32 %v311, %v111
    %v316 = vmul.f32 %v312, %v112
    %v317 = vmul.f32 %v313, %v113
    %v318 = vmul.f32 %v314, %v114
    %v319 = vadd.f32 %v315, 0.0
    %v320 = vadd.f32 %v316, 0.0
    %v321 = vadd.f32 %v317, 0.0
    %v322 = vadd.f32 %v318, 0.0
    %v323 = vld [vmem:[#allocation3] sm:$0xff]
    %v324 = vld [vmem:[#allocation3 + $0x8] sm:$0xff]
    %v325 = vld [vmem:[#allocation3 + $0x10] sm:$0xff]
    %v326 = vld [vmem:[#allocation3 + $0x18] sm:$0xff]
    %v327 = vadd.f32 %v323, %v319
    %v328 = vadd.f32 %v324, %v320
    %v329 = vadd.f32 %v325, %v321
    %v330 = vadd.f32 %v326, %v322
    %331 = vst [vmem:[#allocation6] sm:$0xff] %v327
    %332 = vst [vmem:[#allocation6 + $0x8] sm:$0xff] %v328
    %333 = vst [vmem:[#allocation6 + $0x10] sm:$0xff] %v329
    %334 = vst [vmem:[#allocation6 + $0x18] sm:$0xff] %v330
    // Predicated region
    $region14: #{tpu_custom_call.1} parent=1 // pred_check
      _
    $region15: #{tpu_custom_call.1} parent=1 // pred_check_branch
      %336 = sbr.rel (0) target = $region17
    $region16: #{tpu_custom_call.1} parent=1 // pred_region
      %s338 = ssub.s32 512, 512
      %339 = vsyncadd [#allocation5], %s338
      %s341 = sshll.u32 [#allocation6], 4
      %s342 = int_to_ptr.vmem [resolvable:$true] %s341
      %344 = dma.vmem_to_hbm [thread:$0]  %s342, 512, %s2, [#allocation5]
    $region17: #{tpu_custom_call.1} parent=1 // pred_fallthru
      _
    // Predicated region
    $region18: #{tpu_custom_call.1} parent=1 // pred_check
      _
    $region19: #{tpu_custom_call.1} parent=1 // pred_check_branch
      %346 = sbr.rel (0) target = $region21
    $region20: #{tpu_custom_call.1} parent=1 // pred_region
      %347 = dma.done [#allocation5], 512
    $region21: #{tpu_custom_call.1} parent=1 // pred_fallthru
      _
    %348 = vsyncpa [#allocation4], 1
    %349 = vsyncpa [#allocation5], 1

</llo_original>
